<compile_context>
chip_gen: v7x
topology: tpu7x:2x2x1
jax: 0.10.0
libtpu: 0.0.40
codegen_flags: <defaults>
</compile_context>

<pallas_src>
import jax
import jax.numpy as jnp
from jax.experimental import pallas as pl
from jax.experimental.pallas import tpu as pltpu


IN1, OUT1 = 6, 8
IN2, OUT2 = 8, 10

# Below this many rows the pallas_call launch overhead dominates; let XLA fuse.
# (Crossover moved up after the larger-tile change.)
_PALLAS_MIN_ROWS = 8192
# Lane tile (multiple of 128).  Double-buffered blocks are
#   2*(8 sublanes * tn * 4B)  [x]  +  2*(16 sublanes * tn * 4B)  [y]  = 192*tn bytes
# -> ~12.6 MiB at tn=64K: fits every generation (incl. v7x's 64 MiB/TC VMEM).
_DEFAULT_LANE_TILE = 65536


def _round_up(n, m):
    return ((n + m - 1) // m) * m


def mlp_kernel(xt_ref, w1_ref, b1_ref, w2_ref, b2_ref, ot_ref):
    """Transposed-layout fused MLP tile.

    xt_ref: (6, TN)  features on sublanes, rows on lanes (lane-dense)
    w1_ref: (8, 6)   b1_ref: (8, 1)
    w2_ref: (10, 8)  b2_ref: (10, 1)
    ot_ref: (10, TN) lane-dense output
    """
    x = xt_ref[...]
    h = jnp.dot(w1_ref[...], x, preferred_element_type=jnp.float32) + b1_ref[...]
    h = jnp.tanh(h)
    y = jnp.dot(w2_ref[...], h, preferred_element_type=jnp.float32) + b2_ref[...]
    ot_ref[...] = y.astype(ot_ref.dtype)


def mlp_forward_pallas(x2d, w1, b1, w2, b2, *, lane_tile=_DEFAULT_LANE_TILE):
    """x2d: (N, 6) f32. w1: (8,6), b1: (8,), w2: (10,8), b2: (10,). Returns (N, 10)."""
    n = x2d.shape[0]
    # Multiple of 128; keep >= 2 grid steps when N > 128 so both v7x TCs have work.
    tn = min(lane_tile, max(128, _round_up(pl.cdiv(n, 2), 128)))
    grid = (pl.cdiv(n, tn),)

    # Layout plumbing in XLA: rows onto the lane axis.  No explicit pad: Pallas
    # handles the ragged tail block (columns are independent; OOB lanes are garbage
    # but their output writes are masked by the pipeline).
    xt = jnp.transpose(x2d)                       # (6, N)
    b1c = b1.reshape(OUT1, 1)
    b2c = b2.reshape(OUT2, 1)

    n_lanes = _round_up(n, 128)
    weight_bytes = (IN1 * OUT1 + OUT1 + IN2 * OUT2 + OUT2) * 4
    cost = pl.CostEstimate(
        flops=2 * n * (IN1 * OUT1 + IN2 * OUT2),
        transcendentals=n * OUT1,
        # sublane-padded traffic: 8 f32 rows read + 16 f32 rows written per lane col
        bytes_accessed=n_lanes * (8 + 16) * 4 + weight_bytes,
    )

    # Double-buffered block footprint (x padded to 8 sublanes, y to 16) + headroom.
    block_bytes = 2 * (8 * tn * 4) + 2 * (16 * tn * 4)
    vmem_limit = min(96 << 20, max(32 << 20, block_bytes + (8 << 20)))

    yt = pl.pallas_call(
        mlp_kernel,
        out_shape=jax.ShapeDtypeStruct((OUT2, n), jnp.float32),
        grid=grid,
        in_specs=[
            pl.BlockSpec((IN1, tn), lambda i: (0, i)),     # x tile, pipelined
            pl.BlockSpec((OUT1, IN1), lambda i: (0, 0)),   # weights stay resident
            pl.BlockSpec((OUT1, 1), lambda i: (0, 0)),
            pl.BlockSpec((OUT2, IN2), lambda i: (0, 0)),
            pl.BlockSpec((OUT2, 1), lambda i: (0, 0)),
        ],
        out_specs=pl.BlockSpec((OUT2, tn), lambda i: (0, i)),
        compiler_params=pltpu.CompilerParams(
            dimension_semantics=("parallel",),   # megacore split on v7x
            vmem_limit_bytes=int(vmem_limit),
        ),
        cost_estimate=cost,
    )(xt, w1, b1c, w2, b2c)

    # TODO(synk): for a downstream consumer that accepts (10, N), skip this transpose
    # (it is a full extra HBM pass on a bandwidth-bound op).
    return jnp.transpose(yt)                      # (N, 10)


def _mlp_forward_jnp(x2d, w1, b1, w2, b2):
    h = jnp.tanh(x2d @ w1.T + b1)
    return h @ w2.T + b2


def module_m_forward(x, params, *, force_pallas=False):
    """Reproduces M.forward: y = flatten(linear2(tanh(linear1(x))), 1)."""
    w1, b1, w2, b2 = params
    lead_shape = x.shape[:-1]
    x2d = x.reshape((-1, x.shape[-1]))
    n = x2d.shape[0]
    if force_pallas or n >= _PALLAS_MIN_ROWS:
        y2d = mlp_forward_pallas(x2d, w1, b1, w2, b2)
    else:
        # Small-N fast path: fused XLA beats the custom-call launch overhead.
        y2d = _mlp_forward_jnp(x2d, w1, b1, w2, b2)
    y = y2d.reshape(lead_shape + (OUT2,))
    return y.reshape((y.shape[0], -1))            # torch.flatten(y, 1)


def init_params(key):
    # torch.nn.Linear default init: U(+/- 1/sqrt(fan_in)); weight stored (out, in).
    k1, k2, k3, k4 = jax.random.split(key, 4)
    bnd1 = 1.0 / jnp.sqrt(jnp.float32(IN1))
    bnd2 = 1.0 / jnp.sqrt(jnp.float32(IN2))
    w1 = jax.random.uniform(k1, (OUT1, IN1), jnp.float32, -bnd1, bnd1)
    b1 = jax.random.uniform(k2, (OUT1,), jnp.float32, -bnd1, bnd1)
    w2 = jax.random.uniform(k3, (OUT2, IN2), jnp.float32, -bnd2, bnd2)
    b2 = jax.random.uniform(k4, (OUT2,), jnp.float32, -bnd2, bnd2)
    return w1, b1, w2, b2


def _reference(x, params):
    w1, b1, w2, b2 = params
    h = jnp.tanh(x @ w1.T + b1)
    y = h @ w2.T + b2
    return y.reshape((x.shape[0], -1))


if __name__ == "__main__":
    key = jax.random.PRNGKey(0)
    kp, kx1, kx2 = jax.random.split(key, 3)
    params = init_params(kp)

    # Small demo input (force the Pallas path so the kernel is exercised):
    # 8 rows -> single ragged 128-lane block.
    x_small = jax.random.normal(kx1, (2, 4, 6), jnp.float32)
    y_small = module_m_forward(x_small, params, force_pallas=True)
    jax.block_until_ready(y_small)
    assert y_small.shape == (2, 40), y_small.shape
    assert jnp.allclose(y_small, _reference(x_small, params), atol=1e-5, rtol=1e-5)

    # Medium input: 300 rows -> tn=256, grid=2 (megacore split) with a ragged tail.
    x_med = jax.random.normal(kx2, (3, 100, 6), jnp.float32)
    y_med = module_m_forward(x_med, params, force_pallas=True)
    jax.block_until_ready(y_med)
    assert y_med.shape == (3, 1000), y_med.shape
    assert jnp.allclose(y_med, _reference(x_med, params), atol=1e-5, rtol=1e-5)

    print("KERNEL_OK")
</pallas_src>

<mosaic_0001>
module attributes {stable_mosaic.version = 11 : i64} {
  func.func @mlp_kernel(%arg0: i32, %arg1: memref<6x128xf32, #tpu.memory_space<vmem>>, %arg2: memref<8x6xf32, #tpu.memory_space<vmem>>, %arg3: memref<8x1xf32, #tpu.memory_space<vmem>>, %arg4: memref<10x8xf32, #tpu.memory_space<vmem>>, %arg5: memref<10x1xf32, #tpu.memory_space<vmem>>, %arg6: memref<10x128xf32, #tpu.memory_space<vmem>>) attributes {dimension_semantics = [#tpu.dimension_semantics<parallel>], iteration_bounds = array<i64: 1>, scalar_prefetch = 0 : i64, scratch_operands = 0 : i64, tpu.core_type = #tpu.core_type<tc>, window_params = [{transform_indices = @transform_0, window_bounds = array<i64: 6, 128>}, {pipeline_mode = #tpu.pipeline_mode<synchronous>, transform_indices = @transform_1, window_bounds = array<i64: 8, 6>}, {pipeline_mode = #tpu.pipeline_mode<synchronous>, transform_indices = @transform_2, window_bounds = array<i64: 8, 1>}, {pipeline_mode = #tpu.pipeline_mode<synchronous>, transform_indices = @transform_3, window_bounds = array<i64: 10, 8>}, {pipeline_mode = #tpu.pipeline_mode<synchronous>, transform_indices = @transform_4, window_bounds = array<i64: 10, 1>}, {transform_indices = @transform_5, window_bounds = array<i64: 10, 128>}]} {
    %c0 = arith.constant 0 : index
    %c0_0 = arith.constant 0 : index
    %0 = vector.load %arg1[%c0, %c0_0] : memref<6x128xf32, #tpu.memory_space<vmem>>, vector<6x128xf32>
    %c0_1 = arith.constant 0 : index
    %c0_2 = arith.constant 0 : index
    %1 = vector.load %arg2[%c0_1, %c0_2] : memref<8x6xf32, #tpu.memory_space<vmem>>, vector<8x6xf32>
    %cst = arith.constant dense<0.000000e+00> : vector<8x128xf32>
    %2 = tpu.matmul %1, %0, %cst {dimension_numbers = #tpu.dot_dimension_numbers<[1], [0], [0], [1], [0, 0, 1, 1], [], []>} : vector<8x6xf32>, vector<6x128xf32>, vector<8x128xf32> -> vector<8x128xf32>
    %c0_3 = arith.constant 0 : index
    %c0_4 = arith.constant 0 : index
    %3 = vector.load %arg3[%c0_3, %c0_4] : memref<8x1xf32, #tpu.memory_space<vmem>>, vector<8x1xf32>
    %4 = vector.broadcast %3 : vector<8x1xf32> to vector<8x128xf32>
    %5 = arith.addf %2, %4 : vector<8x128xf32>
    %6 = math.tanh %5 : vector<8x128xf32>
    %c0_5 = arith.constant 0 : index
    %c0_6 = arith.constant 0 : index
    %7 = vector.load %arg4[%c0_5, %c0_6] : memref<10x8xf32, #tpu.memory_space<vmem>>, vector<10x8xf32>
    %cst_7 = arith.constant dense<0.000000e+00> : vector<10x128xf32>
    %8 = tpu.matmul %7, %6, %cst_7 {dimension_numbers = #tpu.dot_dimension_numbers<[1], [0], [0], [1], [0, 0, 1, 1], [], []>} : vector<10x8xf32>, vector<8x128xf32>, vector<10x128xf32> -> vector<10x128xf32>
    %c0_8 = arith.constant 0 : index
    %c0_9 = arith.constant 0 : index
    %9 = vector.load %arg5[%c0_8, %c0_9] : memref<10x1xf32, #tpu.memory_space<vmem>>, vector<10x1xf32>
    %10 = vector.broadcast %9 : vector<10x1xf32> to vector<10x128xf32>
    %11 = arith.addf %8, %10 : vector<10x128xf32>
    %c0_10 = arith.constant 0 : index
    %c0_11 = arith.constant 0 : index
    %12 = vector.load %arg6[%c0_10, %c0_11] : memref<10x128xf32, #tpu.memory_space<vmem>>, vector<10x128xf32>
    tpu.vector_store %arg6[%c0_10, %c0_11], %11 {strides = array<i32>} : memref<10x128xf32, #tpu.memory_space<vmem>>, vector<10x128xf32>,
    return
  }
  func.func @transform_0(%arg0: i32) -> (i32, i32) {
    %c0_i32 = arith.constant 0 : i32
    %c0_i32_0 = arith.constant 0 : i32
    return %c0_i32, %arg0 : i32, i32
  }
  func.func @transform_1(%arg0: i32) -> (i32, i32) {
    %c0_i32 = arith.constant 0 : i32
    %c0_i32_0 = arith.constant 0 : i32
    %c0_i32_1 = arith.constant 0 : i32
    return %c0_i32, %c0_i32_0 : i32, i32
  }
  func.func @transform_2(%arg0: i32) -> (i32, i32) {
    %c0_i32 = arith.constant 0 : i32
    %c0_i32_0 = arith.constant 0 : i32
    %c0_i32_1 = arith.constant 0 : i32
    return %c0_i32, %c0_i32_0 : i32, i32
  }
  func.func @transform_3(%arg0: i32) -> (i32, i32) {
    %c0_i32 = arith.constant 0 : i32
    %c0_i32_0 = arith.constant 0 : i32
    %c0_i32_1 = arith.constant 0 : i32
    return %c0_i32, %c0_i32_0 : i32, i32
  }
  func.func @transform_4(%arg0: i32) -> (i32, i32) {
    %c0_i32 = arith.constant 0 : i32
    %c0_i32_0 = arith.constant 0 : i32
    %c0_i32_1 = arith.constant 0 : i32
    return %c0_i32, %c0_i32_0 : i32, i32
  }
  func.func @transform_5(%arg0: i32) -> (i32, i32) {
    %c0_i32 = arith.constant 0 : i32
    %c0_i32_0 = arith.constant 0 : i32
    return %c0_i32, %arg0 : i32, i32
  }
}

</mosaic_0001>

<llo_original>
// kernel: tpu_custom_call.1
$region0: #{tpu_custom_call.1}
  #allocation0 [shape = 'u32[]', space=smem, size = 0x4, offset = 0x4, fixed_abs, tag = 'smem constant byte address 0x4 - core index']
  #allocation1 [shape = 'u32[144,128]{1,0:T(1,128)}', space=vmem, size = 0x12000, scoped, tag = 'internal scratch']
  %s0 = inlined_call_operand.vmem [shape: f32[6,8], index: 0, kind: input, shape index: {}]
  %s1 = inlined_call_operand.vmem [shape: f32[8,6], index: 1, kind: input, shape index: {}]
  %s2 = inlined_call_operand.vmem [shape: f32[8,1], index: 2, kind: input, shape index: {}]
  %s3 = inlined_call_operand.vmem [shape: f32[10,8], index: 3, kind: input, shape index: {}]
  %s4 = inlined_call_operand.vmem [shape: f32[10,1], index: 4, kind: input, shape index: {}]
  %s5 = inlined_call_operand.vmem [shape: f32[10,8], index: 5, kind: output, shape index: {}]
  %s6 = sld [smem:[#allocation0]]
  $region30: #{tpu_custom_call.1} parent=0
    _
  %s8 = ssub.s32 1, %s6
  %s9 = scalar_select 0, %s8, %s6
  // Predicated region
  $region2: #{tpu_custom_call.1} parent=0 // pred_check
    _
  $region3: #{tpu_custom_call.1} parent=0 // pred_check_branch
    %11 = sbr.rel (0) target = $region5
  $region4: #{tpu_custom_call.1} parent=0 // pred_region
    _
  $region5: #{tpu_custom_call.1} parent=0 // pred_fallthru
    _
  // Predicated region
  $region6: #{tpu_custom_call.1} parent=0 // pred_check
    _
  $region7: #{tpu_custom_call.1} parent=0 // pred_check_branch
    %13 = sbr.rel (0) target = $region9
  $region8: #{tpu_custom_call.1} parent=0 // pred_region
    _
  $region9: #{tpu_custom_call.1} parent=0 // pred_fallthru
    _
  // Predicated region
  $region10: #{tpu_custom_call.1} parent=0 // pred_check
    _
  $region11: #{tpu_custom_call.1} parent=0 // pred_check_branch
    %15 = sbr.rel (0) target = $region13
  $region12: #{tpu_custom_call.1} parent=0 // pred_region
    _
  $region13: #{tpu_custom_call.1} parent=0 // pred_fallthru
    _
  // Predicated region
  $region14: #{tpu_custom_call.1} parent=0 // pred_check
    _
  $region15: #{tpu_custom_call.1} parent=0 // pred_check_branch
    %17 = sbr.rel (0) target = $region17
  $region16: #{tpu_custom_call.1} parent=0 // pred_region
    _
  $region17: #{tpu_custom_call.1} parent=0 // pred_fallthru
    _
  // Predicated region
  $region18: #{tpu_custom_call.1} parent=0 // pred_check
    _
  $region19: #{tpu_custom_call.1} parent=0 // pred_check_branch
    %19 = sbr.rel (0) target = $region21
  $region20: #{tpu_custom_call.1} parent=0 // pred_region
    _
  $region21: #{tpu_custom_call.1} parent=0 // pred_fallthru
    _
  %v20 = vld [vmem:[%s0] sm:$0x3f]
  %v21 = vld [vmem:[%s1] sm:$0xff]
  %v22 = vld [vmem:[%s2] sm:$0xff]
  %24 = vset.pattern.permute.xlu0 0
  %25 = vperm.xlu0 %24, %v22
  %v26 = vpop.permute.xlu0 %25
  %vm28 = vcmask 48128
  %v30 = vsel %vm28, %v21, 0
  %vm32 = vcmask 1045504
  %v34 = vsel %vm32, %v20, 0
  %36 = vmatprep.subr.mxu0 0.0
  %37 = vmatpush1.msra.mxu0 %v34
  %38 = vmatprep.subr.mxu0 0.0
  %39 = vmatpush1.msra.mxu0 0.0
  %40 = vmatprep.subr.mxu0 0.0
  %41 = vmatpush1.msra.mxu0 0.0
  %42 = vmatprep.subr.mxu0 0.0
  %43 = vmatpush1.msra.mxu0 0.0
  %44 = vmatprep.subr.mxu0 0.0
  %45 = vmatpush1.msra.mxu0 0.0
  %46 = vmatprep.subr.mxu0 0.0
  %47 = vmatpush1.msra.mxu0 0.0
  %48 = vmatprep.subr.mxu0 0.0
  %49 = vmatpush1.msra.mxu0 0.0
  %50 = vmatprep.subr.mxu0 0.0
  %51 = vmatpush1.msra.mxu0 0.0
  %52 = vmatprep.subr.mxu0 0.0
  %53 = vmatpush1.msra.mxu0 0.0
  %54 = vmatprep.subr.mxu0 0.0
  %55 = vmatpush1.msra.mxu0 0.0
  %56 = vmatprep.subr.mxu0 0.0
  %57 = vmatpush1.msra.mxu0 0.0
  %58 = vmatprep.subr.mxu0 0.0
  %59 = vmatpush1.msra.mxu0 0.0
  %60 = vmatprep.subr.mxu0 0.0
  %61 = vmatpush1.msra.mxu0 0.0
  %62 = vmatprep.subr.mxu0 0.0
  %63 = vmatpush1.msra.mxu0 0.0
  %64 = vmatprep.subr.mxu0 0.0
  %65 = vmatpush1.msra.mxu0 0.0
  %66 = vmatprep.subr.mxu0 0.0
  %67 = vmatpush1.msra.mxu0 0.0
  %68 = vmatprep.subr.mxu0 0.0
  %69 = vmatpush1.msra.mxu0 0.0
  %70 = vmatprep.subr.mxu0 0.0
  %71 = vmatpush1.msra.mxu0 0.0
  %72 = vmatprep.subr.mxu0 0.0
  %73 = vmatpush1.msra.mxu0 0.0
  %74 = vmatprep.subr.mxu0 0.0
  %75 = vmatpush1.msra.mxu0 0.0
  %76 = vmatprep.subr.mxu0 0.0
  %77 = vmatpush1.msra.mxu0 0.0
  %78 = vmatprep.subr.mxu0 0.0
  %79 = vmatpush1.msra.mxu0 0.0
  %80 = vmatprep.subr.mxu0 0.0
  %81 = vmatpush1.msra.mxu0 0.0
  %82 = vmatprep.subr.mxu0 0.0
  %83 = vmatpush1.msra.mxu0 0.0
  %84 = vmatprep.subr.mxu0 0.0
  %85 = vmatpush1.msra.mxu0 0.0
  %86 = vmatprep.subr.mxu0 0.0
  %87 = vmatpush1.msra.mxu0 0.0
  %88 = vmatprep.subr.mxu0 0.0
  %89 = vmatpush1.msra.mxu0 0.0
  %90 = vmatprep.subr.mxu0 0.0
  %91 = vmatpush1.msra.mxu0 0.0
  %92 = vmatprep.subr.mxu0 0.0
  %93 = vmatpush1.msra.mxu0 0.0
  %94 = vmatprep.subr.mxu0 0.0
  %95 = vmatpush1.msra.mxu0 0.0
  %96 = vmatprep.subr.mxu0 0.0
  %97 = vmatpush1.msra.mxu0 0.0
  %98 = vmatprep.subr.mxu0 0.0
  %99 = vmatpush1.msra.mxu0 0.0
  %100 = vmatprep.mubr.f32.mxu0 0.0
  %101 = vmatmul.mubr.f32.gmra.mrb[0].mxu0 %v30
  %v102 = vpop.f32.mrb[0].mxu0
  %v103 = vadd.f32 %v26, %v102
  %v104 = vpop.f32.mrb[0].mxu0
  %105 = vdwg.mxu0
  %v106 = vtanh.pop %v103
  %v107 = vld [vmem:[%s3] sm:$0xff]
  %v108 = vld [vmem:[%s3 + $0x8] sm:$0x3]
  %v109 = vld [vmem:[%s4] sm:$0xff]
  %v110 = vld [vmem:[%s4 + $0x8] sm:$0x3]
  %112 = vset.pattern.permute.xlu0 0
  %113 = vperm.xlu0 %112, %v109
  %v114 = vpop.permute.xlu0 %113
  %117 = vset.pattern.permute.xlu0 0
  %118 = vperm.xlu0 %117, %v110
  %v119 = vpop.permute.xlu0 %118
  %vm121 = vcmask 64512
  %v123 = vsel %vm121, %v107, 0
  %v126 = vsel %vm121, %v108, 0
  %128 = vmatprep.subr.mxu0 0.0
  %129 = vmatpush1.msra.mxu0 %v106
  %130 = vmatprep.subr.mxu0 0.0
  %131 = vmatpush1.msra.mxu0 0.0
  %132 = vmatprep.subr.mxu0 0.0
  %133 = vmatpush1.msra.mxu0 0.0
  %134 = vmatprep.subr.mxu0 0.0
  %135 = vmatpush1.msra.mxu0 0.0
  %136 = vmatprep.subr.mxu0 0.0
  %137 = vmatpush1.msra.mxu0 0.0
  %138 = vmatprep.subr.mxu0 0.0
  %139 = vmatpush1.msra.mxu0 0.0
  %140 = vmatprep.subr.mxu0 0.0
  %141 = vmatpush1.msra.mxu0 0.0
  %142 = vmatprep.subr.mxu0 0.0
  %143 = vmatpush1.msra.mxu0 0.0
  %144 = vmatprep.subr.mxu0 0.0
  %145 = vmatpush1.msra.mxu0 0.0
  %146 = vmatprep.subr.mxu0 0.0
  %147 = vmatpush1.msra.mxu0 0.0
  %148 = vmatprep.subr.mxu0 0.0
  %149 = vmatpush1.msra.mxu0 0.0
  %150 = vmatprep.subr.mxu0 0.0
  %151 = vmatpush1.msra.mxu0 0.0
  %152 = vmatprep.subr.mxu0 0.0
  %153 = vmatpush1.msra.mxu0 0.0
  %154 = vmatprep.subr.mxu0 0.0
  %155 = vmatpush1.msra.mxu0 0.0
  %156 = vmatprep.subr.mxu0 0.0
  %157 = vmatpush1.msra.mxu0 0.0
  %158 = vmatprep.subr.mxu0 0.0
  %159 = vmatpush1.msra.mxu0 0.0
  %160 = vmatprep.subr.mxu0 0.0
  %161 = vmatpush1.msra.mxu0 0.0
  %162 = vmatprep.subr.mxu0 0.0
  %163 = vmatpush1.msra.mxu0 0.0
  %164 = vmatprep.subr.mxu0 0.0
  %165 = vmatpush1.msra.mxu0 0.0
  %166 = vmatprep.subr.mxu0 0.0
  %167 = vmatpush1.msra.mxu0 0.0
  %168 = vmatprep.subr.mxu0 0.0
  %169 = vmatpush1.msra.mxu0 0.0
  %170 = vmatprep.subr.mxu0 0.0
  %171 = vmatpush1.msra.mxu0 0.0
  %172 = vmatprep.subr.mxu0 0.0
  %173 = vmatpush1.msra.mxu0 0.0
  %174 = vmatprep.subr.mxu0 0.0
  %175 = vmatpush1.msra.mxu0 0.0
  %176 = vmatprep.subr.mxu0 0.0
  %177 = vmatpush1.msra.mxu0 0.0
  %178 = vmatprep.subr.mxu0 0.0
  %179 = vmatpush1.msra.mxu0 0.0
  %180 = vmatprep.subr.mxu0 0.0
  %181 = vmatpush1.msra.mxu0 0.0
  %182 = vmatprep.subr.mxu0 0.0
  %183 = vmatpush1.msra.mxu0 0.0
  %184 = vmatprep.subr.mxu0 0.0
  %185 = vmatpush1.msra.mxu0 0.0
  %186 = vmatprep.subr.mxu0 0.0
  %187 = vmatpush1.msra.mxu0 0.0
  %188 = vmatprep.subr.mxu0 0.0
  %189 = vmatpush1.msra.mxu0 0.0
  %190 = vmatprep.subr.mxu0 0.0
  %191 = vmatpush1.msra.mxu0 0.0
  %192 = vmatprep.mubr.f32.mxu0 0.0
  %193 = vmatmul.mubr.f32.gmra.mrb[0].mxu0 %v123
  %v194 = vpop.f32.mrb[0].mxu0
  %v195 = vadd.f32 %v114, %v194
  %v196 = vpop.f32.mrb[0].mxu0
  %197 = vmatprep.mubr.f32.mxu0 0.0
  %198 = vmatmul.mubr.f32.gmra.mrb[0].mxu0 %v126
  %v199 = vpop.f32.mrb[0].mxu0
  %v200 = vadd.f32 %v119, %v199
  %v201 = vpop.f32.mrb[0].mxu0
  %202 = vdwg.mxu0
  %203 = vst [vmem:[%s5] sm:$0xff] %v195
  %204 = vst [vmem:[%s5 + $0x8] sm:$0x3] %v200
  // Predicated region
  $region22: #{tpu_custom_call.1} parent=0 // pred_check
    _
  $region23: #{tpu_custom_call.1} parent=0 // pred_check_branch
    %206 = sbr.rel (0) target = $region25
  $region24: #{tpu_custom_call.1} parent=0 // pred_region
    _
  $region25: #{tpu_custom_call.1} parent=0 // pred_fallthru
    _
  // Predicated region
  $region26: #{tpu_custom_call.1} parent=0 // pred_check
    _
  $region27: #{tpu_custom_call.1} parent=0 // pred_check_branch
    %208 = sbr.rel (0) target = $region29
  $region28: #{tpu_custom_call.1} parent=0 // pred_region
    _
  $region29: #{tpu_custom_call.1} parent=0 // pred_fallthru
    _

</llo_original>
